<compile_context>
chip_gen: v7x
topology: tpu7x:2x2x1
jax: 0.10.0
libtpu: 0.0.40
codegen_flags: <defaults>
</compile_context>

<pallas_src>
import jax
import jax.numpy as jnp
from jax.experimental import pallas as pl
from jax.experimental.pallas import tpu as pltpu

LANE = 128  # lane-dense padded width for all feature dims


def mlp_kernel(x_ref,
               w1_ref, b1_ref,
               w2_ref, b2_ref,
               w3_ref, b3_ref,
               w4_ref, b4_ref,
               w5_ref, b5_ref,
               w6_ref, b6_ref,
               o_ref):
    x = x_ref[...]

    def dense(h, w_ref, b_ref):
        return jnp.dot(h, w_ref[...], preferred_element_type=jnp.float32) + b_ref[...]

    h = jax.nn.relu(dense(x, w1_ref, b1_ref))
    h = jax.nn.sigmoid(dense(h, w2_ref, b2_ref))
    h = jax.nn.sigmoid(dense(h, w3_ref, b3_ref))
    h = jax.nn.sigmoid(dense(h, w4_ref, b4_ref))
    h = jax.nn.relu(dense(h, w5_ref, b5_ref))
    h = jax.nn.relu(dense(h, w6_ref, b6_ref))
    o_ref[...] = h.astype(o_ref.dtype)


def _pad2(a, rows, cols):
    r, c = a.shape
    return jnp.pad(a, ((0, rows - r), (0, cols - c)))


def net_forward(x, params):
    """x: [B, 3] float32 -> [B, 1] float32."""
    B, _ = x.shape
    Fout = params[-1][0].shape[1]
    n_layers = len(params)

    # Batch tiling: one grid step for small B (whole batch resident, weights
    # loaded once); 256-row lane/sublane-aligned tiles for large B.
    if B <= 512:
        tile_b = B
        Bp = B
    else:
        tile_b = 256
        Bp = pl.cdiv(B, tile_b) * tile_b
    grid = (Bp // tile_b,)

    # Zero-pad everything to lane-dense 128-wide tiles.
    xp = _pad2(x.astype(jnp.float32), Bp, LANE)
    flat_params = []
    in_specs = [pl.BlockSpec((tile_b, LANE), lambda i: (i, 0))]
    for (w, b) in params:
        flat_params.append(_pad2(w.astype(jnp.float32), LANE, LANE))
        flat_params.append(_pad2(b.astype(jnp.float32), 1, LANE))
        # Constant index_map -> weights/biases stay resident across the batch grid.
        in_specs.append(pl.BlockSpec((LANE, LANE), lambda i: (0, 0)))
        in_specs.append(pl.BlockSpec((1, LANE), lambda i: (0, 0)))

    out_spec = pl.BlockSpec((tile_b, LANE), lambda i: (i, 0))

    cost = pl.CostEstimate(
        flops=2 * Bp * n_layers * LANE * LANE,
        transcendentals=3 * Bp * LANE,  # three sigmoid layers
        bytes_accessed=4 * (2 * Bp * LANE + n_layers * (LANE * LANE + LANE)),
    )

    out = pl.pallas_call(
        mlp_kernel,
        out_shape=jax.ShapeDtypeStruct((Bp, LANE), jnp.float32),
        grid_spec=pl.GridSpec(grid=grid, in_specs=in_specs, out_specs=out_spec),
        compiler_params=pltpu.CompilerParams(
            dimension_semantics=("parallel",)),
        cost_estimate=cost,
    )(xp, *flat_params)

    return out[:B, :Fout]


def init_params(key):
    """Deterministic init mimicking torch.nn.Linear (uniform +/- 1/sqrt(fan_in)).

    Returns list of (W [in, out], b [1, out]) pairs for l1..l5, l6.
    (l7 / l8 from the PyTorch module are unused in forward and omitted.)
    """
    dims = [(3, 100), (100, 100), (100, 100), (100, 100), (100, 100), (100, 1)]
    params = []
    for (fan_in, fan_out) in dims:
        key, kw, kb = jax.random.split(key, 3)
        bound = 1.0 / (fan_in ** 0.5)
        w = jax.random.uniform(kw, (fan_in, fan_out), jnp.float32, -bound, bound)
        b = jax.random.uniform(kb, (1, fan_out), jnp.float32, -bound, bound)
        params.append((w, b))
    return params


def net_forward_ref(x, params):
    """Pure-JAX reference for correctness checking (unpadded f32)."""
    (w1, b1), (w2, b2), (w3, b3), (w4, b4), (w5, b5), (w6, b6) = params
    h = jax.nn.relu(x @ w1 + b1)
    h = jax.nn.sigmoid(h @ w2 + b2)
    h = jax.nn.sigmoid(h @ w3 + b3)
    h = jax.nn.sigmoid(h @ w4 + b4)
    h = jax.nn.relu(h @ w5 + b5)
    return jax.nn.relu(h @ w6 + b6)


if __name__ == "__main__":
    key = jax.random.PRNGKey(0)
    k_params, k_x = jax.random.split(key)

    params = init_params(k_params)
    B = 16
    x = jax.random.normal(k_x, (B, 3), jnp.float32)

    out = net_forward(x, params)
    out = jax.block_until_ready(out)

    ref = net_forward_ref(x, params)
    assert out.shape == (B, 1)
    assert jnp.allclose(out, ref, atol=1e-4, rtol=1e-5), "mismatch vs reference"

    print("KERNEL_OK")
</pallas_src>

<mosaic_0001>
module attributes {stable_mosaic.version = 11 : i64} {
  func.func @mlp_kernel(%arg0: i32, %arg1: memref<16x128xf32, #tpu.memory_space<vmem>>, %arg2: memref<128x128xf32, #tpu.memory_space<vmem>>, %arg3: memref<1x128xf32, #tpu.memory_space<vmem>>, %arg4: memref<128x128xf32, #tpu.memory_space<vmem>>, %arg5: memref<1x128xf32, #tpu.memory_space<vmem>>, %arg6: memref<128x128xf32, #tpu.memory_space<vmem>>, %arg7: memref<1x128xf32, #tpu.memory_space<vmem>>, %arg8: memref<128x128xf32, #tpu.memory_space<vmem>>, %arg9: memref<1x128xf32, #tpu.memory_space<vmem>>, %arg10: memref<128x128xf32, #tpu.memory_space<vmem>>, %arg11: memref<1x128xf32, #tpu.memory_space<vmem>>, %arg12: memref<128x128xf32, #tpu.memory_space<vmem>>, %arg13: memref<1x128xf32, #tpu.memory_space<vmem>>, %arg14: memref<16x128xf32, #tpu.memory_space<vmem>>) attributes {dimension_semantics = [#tpu.dimension_semantics<parallel>], iteration_bounds = array<i64: 1>, scalar_prefetch = 0 : i64, scratch_operands = 0 : i64, tpu.core_type = #tpu.core_type<tc>, window_params = [{transform_indices = @transform_0, window_bounds = array<i64: 16, 128>}, {pipeline_mode = #tpu.pipeline_mode<synchronous>, transform_indices = @transform_1, window_bounds = array<i64: 128, 128>}, {pipeline_mode = #tpu.pipeline_mode<synchronous>, transform_indices = @transform_2, window_bounds = array<i64: 1, 128>}, {pipeline_mode = #tpu.pipeline_mode<synchronous>, transform_indices = @transform_3, window_bounds = array<i64: 128, 128>}, {pipeline_mode = #tpu.pipeline_mode<synchronous>, transform_indices = @transform_4, window_bounds = array<i64: 1, 128>}, {pipeline_mode = #tpu.pipeline_mode<synchronous>, transform_indices = @transform_5, window_bounds = array<i64: 128, 128>}, {pipeline_mode = #tpu.pipeline_mode<synchronous>, transform_indices = @transform_6, window_bounds = array<i64: 1, 128>}, {pipeline_mode = #tpu.pipeline_mode<synchronous>, transform_indices = @transform_7, window_bounds = array<i64: 128, 128>}, {pipeline_mode = #tpu.pipeline_mode<synchronous>, transform_indices = @transform_8, window_bounds = array<i64: 1, 128>}, {pipeline_mode = #tpu.pipeline_mode<synchronous>, transform_indices = @transform_9, window_bounds = array<i64: 128, 128>}, {pipeline_mode = #tpu.pipeline_mode<synchronous>, transform_indices = @transform_10, window_bounds = array<i64: 1, 128>}, {pipeline_mode = #tpu.pipeline_mode<synchronous>, transform_indices = @transform_11, window_bounds = array<i64: 128, 128>}, {pipeline_mode = #tpu.pipeline_mode<synchronous>, transform_indices = @transform_12, window_bounds = array<i64: 1, 128>}, {transform_indices = @transform_13, window_bounds = array<i64: 16, 128>}]} {
    %c0 = arith.constant 0 : index
    %c0_0 = arith.constant 0 : index
    %0 = vector.load %arg1[%c0, %c0_0] : memref<16x128xf32, #tpu.memory_space<vmem>>, vector<16x128xf32>
    %c0_1 = arith.constant 0 : index
    %c0_2 = arith.constant 0 : index
    %1 = vector.load %arg2[%c0_1, %c0_2] : memref<128x128xf32, #tpu.memory_space<vmem>>, vector<128x128xf32>
    %cst = arith.constant dense<0.000000e+00> : vector<16x128xf32>
    %2 = tpu.matmul %0, %1, %cst {dimension_numbers = #tpu.dot_dimension_numbers<[1], [0], [0], [1], [0, 0, 1, 1], [], []>} : vector<16x128xf32>, vector<128x128xf32>, vector<16x128xf32> -> vector<16x128xf32>
    %c0_3 = arith.constant 0 : index
    %c0_4 = arith.constant 0 : index
    %3 = vector.load %arg3[%c0_3, %c0_4] : memref<1x128xf32, #tpu.memory_space<vmem>>, vector<1x128xf32>
    %4 = vector.broadcast %3 : vector<1x128xf32> to vector<16x128xf32>
    %5 = arith.addf %2, %4 : vector<16x128xf32>
    %cst_5 = arith.constant 0.000000e+00 : f32
    %6 = vector.broadcast %cst_5 : f32 to vector<16x128xf32>
    %7 = arith.maximumf %5, %6 : vector<16x128xf32>
    %c0_6 = arith.constant 0 : index
    %c0_7 = arith.constant 0 : index
    %8 = vector.load %arg4[%c0_6, %c0_7] : memref<128x128xf32, #tpu.memory_space<vmem>>, vector<128x128xf32>
    %cst_8 = arith.constant dense<0.000000e+00> : vector<16x128xf32>
    %9 = tpu.matmul %7, %8, %cst_8 {dimension_numbers = #tpu.dot_dimension_numbers<[1], [0], [0], [1], [0, 0, 1, 1], [], []>} : vector<16x128xf32>, vector<128x128xf32>, vector<16x128xf32> -> vector<16x128xf32>
    %c0_9 = arith.constant 0 : index
    %c0_10 = arith.constant 0 : index
    %10 = vector.load %arg5[%c0_9, %c0_10] : memref<1x128xf32, #tpu.memory_space<vmem>>, vector<1x128xf32>
    %11 = vector.broadcast %10 : vector<1x128xf32> to vector<16x128xf32>
    %12 = arith.addf %9, %11 : vector<16x128xf32>
    %13 = arith.negf %12 : vector<16x128xf32>
    %14 = math.exp %13 : vector<16x128xf32>
    %cst_11 = arith.constant 1.000000e+00 : f32
    %15 = vector.broadcast %cst_11 : f32 to vector<16x128xf32>
    %16 = arith.addf %15, %14 : vector<16x128xf32>
    %17 = arith.divf %15, %16 : vector<16x128xf32>
    %c0_12 = arith.constant 0 : index
    %c0_13 = arith.constant 0 : index
    %18 = vector.load %arg6[%c0_12, %c0_13] : memref<128x128xf32, #tpu.memory_space<vmem>>, vector<128x128xf32>
    %cst_14 = arith.constant dense<0.000000e+00> : vector<16x128xf32>
    %19 = tpu.matmul %17, %18, %cst_14 {dimension_numbers = #tpu.dot_dimension_numbers<[1], [0], [0], [1], [0, 0, 1, 1], [], []>} : vector<16x128xf32>, vector<128x128xf32>, vector<16x128xf32> -> vector<16x128xf32>
    %c0_15 = arith.constant 0 : index
    %c0_16 = arith.constant 0 : index
    %20 = vector.load %arg7[%c0_15, %c0_16] : memref<1x128xf32, #tpu.memory_space<vmem>>, vector<1x128xf32>
    %21 = vector.broadcast %20 : vector<1x128xf32> to vector<16x128xf32>
    %22 = arith.addf %19, %21 : vector<16x128xf32>
    %23 = arith.negf %22 : vector<16x128xf32>
    %24 = math.exp %23 : vector<16x128xf32>
    %cst_17 = arith.constant 1.000000e+00 : f32
    %25 = vector.broadcast %cst_17 : f32 to vector<16x128xf32>
    %26 = arith.addf %25, %24 : vector<16x128xf32>
    %27 = arith.divf %25, %26 : vector<16x128xf32>
    %c0_18 = arith.constant 0 : index
    %c0_19 = arith.constant 0 : index
    %28 = vector.load %arg8[%c0_18, %c0_19] : memref<128x128xf32, #tpu.memory_space<vmem>>, vector<128x128xf32>
    %cst_20 = arith.constant dense<0.000000e+00> : vector<16x128xf32>
    %29 = tpu.matmul %27, %28, %cst_20 {dimension_numbers = #tpu.dot_dimension_numbers<[1], [0], [0], [1], [0, 0, 1, 1], [], []>} : vector<16x128xf32>, vector<128x128xf32>, vector<16x128xf32> -> vector<16x128xf32>
    %c0_21 = arith.constant 0 : index
    %c0_22 = arith.constant 0 : index
    %30 = vector.load %arg9[%c0_21, %c0_22] : memref<1x128xf32, #tpu.memory_space<vmem>>, vector<1x128xf32>
    %31 = vector.broadcast %30 : vector<1x128xf32> to vector<16x128xf32>
    %32 = arith.addf %29, %31 : vector<16x128xf32>
    %33 = arith.negf %32 : vector<16x128xf32>
    %34 = math.exp %33 : vector<16x128xf32>
    %cst_23 = arith.constant 1.000000e+00 : f32
    %35 = vector.broadcast %cst_23 : f32 to vector<16x128xf32>
    %36 = arith.addf %35, %34 : vector<16x128xf32>
    %37 = arith.divf %35, %36 : vector<16x128xf32>
    %c0_24 = arith.constant 0 : index
    %c0_25 = arith.constant 0 : index
    %38 = vector.load %arg10[%c0_24, %c0_25] : memref<128x128xf32, #tpu.memory_space<vmem>>, vector<128x128xf32>
    %cst_26 = arith.constant dense<0.000000e+00> : vector<16x128xf32>
    %39 = tpu.matmul %37, %38, %cst_26 {dimension_numbers = #tpu.dot_dimension_numbers<[1], [0], [0], [1], [0, 0, 1, 1], [], []>} : vector<16x128xf32>, vector<128x128xf32>, vector<16x128xf32> -> vector<16x128xf32>
    %c0_27 = arith.constant 0 : index
    %c0_28 = arith.constant 0 : index
    %40 = vector.load %arg11[%c0_27, %c0_28] : memref<1x128xf32, #tpu.memory_space<vmem>>, vector<1x128xf32>
    %41 = vector.broadcast %40 : vector<1x128xf32> to vector<16x128xf32>
    %42 = arith.addf %39, %41 : vector<16x128xf32>
    %cst_29 = arith.constant 0.000000e+00 : f32
    %43 = vector.broadcast %cst_29 : f32 to vector<16x128xf32>
    %44 = arith.maximumf %42, %43 : vector<16x128xf32>
    %c0_30 = arith.constant 0 : index
    %c0_31 = arith.constant 0 : index
    %45 = vector.load %arg12[%c0_30, %c0_31] : memref<128x128xf32, #tpu.memory_space<vmem>>, vector<128x128xf32>
    %cst_32 = arith.constant dense<0.000000e+00> : vector<16x128xf32>
    %46 = tpu.matmul %44, %45, %cst_32 {dimension_numbers = #tpu.dot_dimension_numbers<[1], [0], [0], [1], [0, 0, 1, 1], [], []>} : vector<16x128xf32>, vector<128x128xf32>, vector<16x128xf32> -> vector<16x128xf32>
    %c0_33 = arith.constant 0 : index
    %c0_34 = arith.constant 0 : index
    %47 = vector.load %arg13[%c0_33, %c0_34] : memref<1x128xf32, #tpu.memory_space<vmem>>, vector<1x128xf32>
    %48 = vector.broadcast %47 : vector<1x128xf32> to vector<16x128xf32>
    %49 = arith.addf %46, %48 : vector<16x128xf32>
    %cst_35 = arith.constant 0.000000e+00 : f32
    %50 = vector.broadcast %cst_35 : f32 to vector<16x128xf32>
    %51 = arith.maximumf %49, %50 : vector<16x128xf32>
    %c0_36 = arith.constant 0 : index
    %c0_37 = arith.constant 0 : index
    %52 = vector.load %arg14[%c0_36, %c0_37] : memref<16x128xf32, #tpu.memory_space<vmem>>, vector<16x128xf32>
    tpu.vector_store %arg14[%c0_36, %c0_37], %51 {strides = array<i32>} : memref<16x128xf32, #tpu.memory_space<vmem>>, vector<16x128xf32>,
    return
  }
  func.func @transform_0(%arg0: i32) -> (i32, i32) {
    %c0_i32 = arith.constant 0 : i32
    %c0_i32_0 = arith.constant 0 : i32
    return %arg0, %c0_i32 : i32, i32
  }
  func.func @transform_1(%arg0: i32) -> (i32, i32) {
    %c0_i32 = arith.constant 0 : i32
    %c0_i32_0 = arith.constant 0 : i32
    %c0_i32_1 = arith.constant 0 : i32
    return %c0_i32, %c0_i32_0 : i32, i32
  }
  func.func @transform_2(%arg0: i32) -> (i32, i32) {
    %c0_i32 = arith.constant 0 : i32
    %c0_i32_0 = arith.constant 0 : i32
    %c0_i32_1 = arith.constant 0 : i32
    return %c0_i32, %c0_i32_0 : i32, i32
  }
  func.func @transform_3(%arg0: i32) -> (i32, i32) {
    %c0_i32 = arith.constant 0 : i32
    %c0_i32_0 = arith.constant 0 : i32
    %c0_i32_1 = arith.constant 0 : i32
    return %c0_i32, %c0_i32_0 : i32, i32
  }
  func.func @transform_4(%arg0: i32) -> (i32, i32) {
    %c0_i32 = arith.constant 0 : i32
    %c0_i32_0 = arith.constant 0 : i32
    %c0_i32_1 = arith.constant 0 : i32
    return %c0_i32, %c0_i32_0 : i32, i32
  }
  func.func @transform_5(%arg0: i32) -> (i32, i32) {
    %c0_i32 = arith.constant 0 : i32
    %c0_i32_0 = arith.constant 0 : i32
    %c0_i32_1 = arith.constant 0 : i32
    return %c0_i32, %c0_i32_0 : i32, i32
  }
  func.func @transform_6(%arg0: i32) -> (i32, i32) {
    %c0_i32 = arith.constant 0 : i32
    %c0_i32_0 = arith.constant 0 : i32
    %c0_i32_1 = arith.constant 0 : i32
    return %c0_i32, %c0_i32_0 : i32, i32
  }
  func.func @transform_7(%arg0: i32) -> (i32, i32) {
    %c0_i32 = arith.constant 0 : i32
    %c0_i32_0 = arith.constant 0 : i32
    %c0_i32_1 = arith.constant 0 : i32
    return %c0_i32, %c0_i32_0 : i32, i32
  }
  func.func @transform_8(%arg0: i32) -> (i32, i32) {
    %c0_i32 = arith.constant 0 : i32
    %c0_i32_0 = arith.constant 0 : i32
    %c0_i32_1 = arith.constant 0 : i32
    return %c0_i32, %c0_i32_0 : i32, i32
  }
  func.func @transform_9(%arg0: i32) -> (i32, i32) {
    %c0_i32 = arith.constant 0 : i32
    %c0_i32_0 = arith.constant 0 : i32
    %c0_i32_1 = arith.constant 0 : i32
    return %c0_i32, %c0_i32_0 : i32, i32
  }
  func.func @transform_10(%arg0: i32) -> (i32, i32) {
    %c0_i32 = arith.constant 0 : i32
    %c0_i32_0 = arith.constant 0 : i32
    %c0_i32_1 = arith.constant 0 : i32
    return %c0_i32, %c0_i32_0 : i32, i32
  }
  func.func @transform_11(%arg0: i32) -> (i32, i32) {
    %c0_i32 = arith.constant 0 : i32
    %c0_i32_0 = arith.constant 0 : i32
    %c0_i32_1 = arith.constant 0 : i32
    return %c0_i32, %c0_i32_0 : i32, i32
  }
  func.func @transform_12(%arg0: i32) -> (i32, i32) {
    %c0_i32 = arith.constant 0 : i32
    %c0_i32_0 = arith.constant 0 : i32
    %c0_i32_1 = arith.constant 0 : i32
    return %c0_i32, %c0_i32_0 : i32, i32
  }
  func.func @transform_13(%arg0: i32) -> (i32, i32) {
    %c0_i32 = arith.constant 0 : i32
    %c0_i32_0 = arith.constant 0 : i32
    return %arg0, %c0_i32 : i32, i32
  }
}

</mosaic_0001>

<llo_original>
// kernel: tpu_custom_call.1
$region0: #{tpu_custom_call.1}
  #allocation0 [shape = 'u32[]', space=smem, size = 0x4, offset = 0x4, fixed_abs, tag = 'smem constant byte address 0x4 - core index']
  #allocation1 [shape = 'u32[144,128]{1,0:T(1,128)}', space=vmem, size = 0x12000, scoped, tag = 'internal scratch']
  %s0 = inlined_call_operand.hbm [shape: f32[16,128], index: 0, kind: input, shape index: {}]
  %s1 = inlined_call_operand.hbm [shape: f32[128,128], index: 1, kind: input, shape index: {}]
  %s2 = inlined_call_operand.vmem [shape: f32[1,128], index: 2, kind: input, shape index: {}]
  %s3 = inlined_call_operand.hbm [shape: f32[128,128], index: 3, kind: input, shape index: {}]
  %s4 = inlined_call_operand.vmem [shape: f32[1,128], index: 4, kind: input, shape index: {}]
  %s5 = inlined_call_operand.hbm [shape: f32[128,128], index: 5, kind: input, shape index: {}]
  %s6 = inlined_call_operand.vmem [shape: f32[1,128], index: 6, kind: input, shape index: {}]
  %s7 = inlined_call_operand.hbm [shape: f32[128,128], index: 7, kind: input, shape index: {}]
  %s8 = inlined_call_operand.vmem [shape: f32[1,128], index: 8, kind: input, shape index: {}]
  %s9 = inlined_call_operand.hbm [shape: f32[128,128], index: 9, kind: input, shape index: {}]
  %s10 = inlined_call_operand.vmem [shape: f32[1,128], index: 10, kind: input, shape index: {}]
  %s11 = inlined_call_operand.hbm [shape: f32[128,128], index: 11, kind: input, shape index: {}]
  %s12 = inlined_call_operand.vmem [shape: f32[1,128], index: 12, kind: input, shape index: {}]
  %s13 = inlined_call_operand.hbm [shape: f32[16,128], index: 13, kind: output, shape index: {}]
  %s14 = sld [smem:[#allocation0]]
  $region90: #{tpu_custom_call.1} parent=0
    _
  %s16 = ssub.s32 1, %s14
  %s17 = scalar_select 0, %s16, %s14
  $region1: #{tpu_custom_call.1} parent=0
    #allocation2 [shape = 'u8[8192]{0}', space=vmem, size = 0x2000, scoped, tag = 'input window, operand 0, single buffered']
    #allocation3 [shape = 's32[1]{0}', space=sflag, size = 0x4, scoped, tag = 'scoped memory for tpu_custom_call.1']
    #allocation4 [shape = 's32[1]{0}', space=sflag, size = 0x4, scoped, tag = 'scoped memory for tpu_custom_call.1']
    #allocation5 [shape = 'u8[65536]{0}', space=vmem, size = 0x10000, scoped, tag = 'input window, operand 1, single buffered']
    #allocation6 [shape = 's32[1]{0}', space=sflag, size = 0x4, scoped, tag = 'scoped memory for tpu_custom_call.1']
    #allocation7 [shape = 'u8[65536]{0}', space=vmem, size = 0x10000, scoped, tag = 'input window, operand 3, single buffered']
    #allocation8 [shape = 'u8[65536]{0}', space=vmem, size = 0x10000, scoped, tag = 'input window, operand 5, single buffered']
    #allocation9 [shape = 's32[1]{0}', space=sflag, size = 0x4, scoped, tag = 'scoped memory for tpu_custom_call.1']
    #allocation10 [shape = 'u8[65536]{0}', space=vmem, size = 0x10000, scoped, tag = 'input window, operand 7, single buffered']
    #allocation11 [shape = 'u8[65536]{0}', space=vmem, size = 0x10000, scoped, tag = 'input window, operand 9, single buffered']
    #allocation12 [shape = 's32[1]{0}', space=sflag, size = 0x4, scoped, tag = 'scoped memory for tpu_custom_call.1']
    #allocation13 [shape = 'u8[65536]{0}', space=vmem, size = 0x10000, scoped, tag = 'input window, operand 11, single buffered']
    #allocation14 [shape = 'u8[8192]{0}', space=vmem, size = 0x2000, scoped, tag = 'output window, operand 0, single buffered']
    %18 = vsyncpa [#allocation3], 0
    %19 = vsyncpa [#allocation6], 0
    %20 = vsyncpa [#allocation9], 0
    %21 = vsyncpa [#allocation12], 0
    %22 = vsyncpa [#allocation4], 0
    // Predicated region
    $region2: #{tpu_custom_call.1} parent=1 // pred_check
      _
    $region3: #{tpu_custom_call.1} parent=1 // pred_check_branch
      %24 = sbr.rel (0) target = $region5
    $region4: #{tpu_custom_call.1} parent=1 // pred_region
      %s26 = ssub.s32 256, 256
      %27 = vsyncadd [#allocation3], %s26
      %s28 = sshll.u32 [#allocation2], 4
      %s29 = int_to_ptr.vmem [resolvable:$true] %s28
      %34 = dma.hbm_to_vmem [thread:$0]  %s0, 256, %s29, [#allocation3], 128, 128, 8
    $region5: #{tpu_custom_call.1} parent=1 // pred_fallthru
      _
    // Predicated region
    $region6: #{tpu_custom_call.1} parent=1 // pred_check
      _
    $region7: #{tpu_custom_call.1} parent=1 // pred_check_branch
      %36 = sbr.rel (0) target = $region9
    $region8: #{tpu_custom_call.1} parent=1 // pred_region
      %s38 = ssub.s32 2048, 2048
      %39 = vsyncadd [#allocation6], %s38
      %s40 = sshll.u32 [#allocation5], 4
      %s41 = int_to_ptr.vmem [resolvable:$true] %s40
      %46 = dma.hbm_to_vmem [thread:$0]  %s1, 2048, %s41, [#allocation6], 128, 128, 8
    $region9: #{tpu_custom_call.1} parent=1 // pred_fallthru
      _
    // Predicated region
    $region10: #{tpu_custom_call.1} parent=1 // pred_check
      _
    $region11: #{tpu_custom_call.1} parent=1 // pred_check_branch
      %48 = sbr.rel (0) target = $region13
    $region12: #{tpu_custom_call.1} parent=1 // pred_region
      _
    $region13: #{tpu_custom_call.1} parent=1 // pred_fallthru
      _
    // Predicated region
    $region14: #{tpu_custom_call.1} parent=1 // pred_check
      _
    $region15: #{tpu_custom_call.1} parent=1 // pred_check_branch
      %50 = sbr.rel (0) target = $region17
    $region16: #{tpu_custom_call.1} parent=1 // pred_region
      %s52 = ssub.s32 2048, 2048
      %53 = vsyncadd [#allocation6], %s52
      %s54 = sshll.u32 [#allocation7], 4
      %s55 = int_to_ptr.vmem [resolvable:$true] %s54
      %60 = dma.hbm_to_vmem [thread:$0]  %s3, 2048, %s55, [#allocation6], 128, 128, 8
    $region17: #{tpu_custom_call.1} parent=1 // pred_fallthru
      _
    // Predicated region
    $region18: #{tpu_custom_call.1} parent=1 // pred_check
      _
    $region19: #{tpu_custom_call.1} parent=1 // pred_check_branch
      %62 = sbr.rel (0) target = $region21
    $region20: #{tpu_custom_call.1} parent=1 // pred_region
      _
    $region21: #{tpu_custom_call.1} parent=1 // pred_fallthru
      _
    // Predicated region
    $region22: #{tpu_custom_call.1} parent=1 // pred_check
      _
    $region23: #{tpu_custom_call.1} parent=1 // pred_check_branch
      %64 = sbr.rel (0) target = $region25
    $region24: #{tpu_custom_call.1} parent=1 // pred_region
      %s66 = ssub.s32 2048, 2048
      %67 = vsyncadd [#allocation9], %s66
      %s68 = sshll.u32 [#allocation8], 4
      %s69 = int_to_ptr.vmem [resolvable:$true] %s68
      %74 = dma.hbm_to_vmem [thread:$0]  %s5, 2048, %s69, [#allocation9], 128, 128, 8
    $region25: #{tpu_custom_call.1} parent=1 // pred_fallthru
      _
    // Predicated region
    $region26: #{tpu_custom_call.1} parent=1 // pred_check
      _
    $region27: #{tpu_custom_call.1} parent=1 // pred_check_branch
      %76 = sbr.rel (0) target = $region29
    $region28: #{tpu_custom_call.1} parent=1 // pred_region
      _
    $region29: #{tpu_custom_call.1} parent=1 // pred_fallthru
      _
    // Predicated region
    $region30: #{tpu_custom_call.1} parent=1 // pred_check
      _
    $region31: #{tpu_custom_call.1} parent=1 // pred_check_branch
      %78 = sbr.rel (0) target = $region33
    $region32: #{tpu_custom_call.1} parent=1 // pred_region
      %s80 = ssub.s32 2048, 2048
      %81 = vsyncadd [#allocation9], %s80
      %s82 = sshll.u32 [#allocation10], 4
      %s83 = int_to_ptr.vmem [resolvable:$true] %s82
      %88 = dma.hbm_to_vmem [thread:$0]  %s7, 2048, %s83, [#allocation9], 128, 128, 8
    $region33: #{tpu_custom_call.1} parent=1 // pred_fallthru
      _
    // Predicated region
    $region34: #{tpu_custom_call.1} parent=1 // pred_check
      _
    $region35: #{tpu_custom_call.1} parent=1 // pred_check_branch
      %90 = sbr.rel (0) target = $region37
    $region36: #{tpu_custom_call.1} parent=1 // pred_region
      _
    $region37: #{tpu_custom_call.1} parent=1 // pred_fallthru
      _
    // Predicated region
    $region38: #{tpu_custom_call.1} parent=1 // pred_check
      _
    $region39: #{tpu_custom_call.1} parent=1 // pred_check_branch
      %92 = sbr.rel (0) target = $region41
    $region40: #{tpu_custom_call.1} parent=1 // pred_region
      %s94 = ssub.s32 2048, 2048
      %95 = vsyncadd [#allocation12], %s94
      %s96 = sshll.u32 [#allocation11], 4
      %s97 = int_to_ptr.vmem [resolvable:$true] %s96
      %102 = dma.hbm_to_vmem [thread:$0]  %s9, 2048, %s97, [#allocation12], 128, 128, 8
    $region41: #{tpu_custom_call.1} parent=1 // pred_fallthru
      _
    // Predicated region
    $region42: #{tpu_custom_call.1} parent=1 // pred_check
      _
    $region43: #{tpu_custom_call.1} parent=1 // pred_check_branch
      %104 = sbr.rel (0) target = $region45
    $region44: #{tpu_custom_call.1} parent=1 // pred_region
      _
    $region45: #{tpu_custom_call.1} parent=1 // pred_fallthru
      _
    // Predicated region
    $region46: #{tpu_custom_call.1} parent=1 // pred_check
      _
    $region47: #{tpu_custom_call.1} parent=1 // pred_check_branch
      %106 = sbr.rel (0) target = $region49
    $region48: #{tpu_custom_call.1} parent=1 // pred_region
      %s108 = ssub.s32 2048, 2048
      %109 = vsyncadd [#allocation12], %s108
      %s110 = sshll.u32 [#allocation13], 4
      %s111 = int_to_ptr.vmem [resolvable:$true] %s110
      %116 = dma.hbm_to_vmem [thread:$0]  %s11, 2048, %s111, [#allocation12], 128, 128, 8
    $region49: #{tpu_custom_call.1} parent=1 // pred_fallthru
      _
    // Predicated region
    $region50: #{tpu_custom_call.1} parent=1 // pred_check
      _
    $region51: #{tpu_custom_call.1} parent=1 // pred_check_branch
      %118 = sbr.rel (0) target = $region53
    $region52: #{tpu_custom_call.1} parent=1 // pred_region
      _
    $region53: #{tpu_custom_call.1} parent=1 // pred_fallthru
      _
    // Predicated region
    $region54: #{tpu_custom_call.1} parent=1 // pred_check
      _
    $region55: #{tpu_custom_call.1} parent=1 // pred_check_branch
      %120 = sbr.rel (0) target = $region57
    $region56: #{tpu_custom_call.1} parent=1 // pred_region
      %121 = dma.done [#allocation3], 256
    $region57: #{tpu_custom_call.1} parent=1 // pred_fallthru
      _
    // Predicated region
    $region58: #{tpu_custom_call.1} parent=1 // pred_check
      _
    $region59: #{tpu_custom_call.1} parent=1 // pred_check_branch
      %123 = sbr.rel (0) target = $region61
    $region60: #{tpu_custom_call.1} parent=1 // pred_region
      %124 = dma.done [#allocation6], 2048
    $region61: #{tpu_custom_call.1} parent=1 // pred_fallthru
      _
    // Predicated region
    $region62: #{tpu_custom_call.1} parent=1 // pred_check
      _
    $region63: #{tpu_custom_call.1} parent=1 // pred_check_branch
      %126 = sbr.rel (0) target = $region65
    $region64: #{tpu_custom_call.1} parent=1 // pred_region
      %127 = dma.done [#allocation6], 2048
    $region65: #{tpu_custom_call.1} parent=1 // pred_fallthru
      _
    // Predicated region
    $region66: #{tpu_custom_call.1} parent=1 // pred_check
      _
    $region67: #{tpu_custom_call.1} parent=1 // pred_check_branch
      %129 = sbr.rel (0) target = $region69
    $region68: #{tpu_custom_call.1} parent=1 // pred_region
      %130 = dma.done [#allocation9], 2048
    $region69: #{tpu_custom_call.1} parent=1 // pred_fallthru
      _
    // Predicated region
    $region70: #{tpu_custom_call.1} parent=1 // pred_check
      _
    $region71: #{tpu_custom_call.1} parent=1 // pred_check_branch
      %132 = sbr.rel (0) target = $region73
    $region72: #{tpu_custom_call.1} parent=1 // pred_region
      %133 = dma.done [#allocation9], 2048
    $region73: #{tpu_custom_call.1} parent=1 // pred_fallthru
      _
    // Predicated region
    $region74: #{tpu_custom_call.1} parent=1 // pred_check
      _
    $region75: #{tpu_custom_call.1} parent=1 // pred_check_branch
      %135 = sbr.rel (0) target = $region77
    $region76: #{tpu_custom_call.1} parent=1 // pred_region
      %136 = dma.done [#allocation12], 2048
    $region77: #{tpu_custom_call.1} parent=1 // pred_fallthru
      _
    // Predicated region
    $region78: #{tpu_custom_call.1} parent=1 // pred_check
      _
    $region79: #{tpu_custom_call.1} parent=1 // pred_check_branch
      %138 = sbr.rel (0) target = $region81
    $region80: #{tpu_custom_call.1} parent=1 // pred_region
      %139 = dma.done [#allocation12], 2048
    $region81: #{tpu_custom_call.1} parent=1 // pred_fallthru
      _
    %v140 = vld [vmem:[#allocation2] sm:$0xff]
    %v141 = vld [vmem:[#allocation2 + $0x8] sm:$0xff]
    %v142 = vld [vmem:[#allocation5] sm:$0xff]
    %v143 = vld [vmem:[#allocation5 + $0x8] sm:$0xff]
    %v144 = vld [vmem:[#allocation5 + $0x10] sm:$0xff]
    %v145 = vld [vmem:[#allocation5 + $0x18] sm:$0xff]
    %v146 = vld [vmem:[#allocation5 + $0x20] sm:$0xff]
    %v147 = vld [vmem:[#allocation5 + $0x28] sm:$0xff]
    %v148 = vld [vmem:[#allocation5 + $0x30] sm:$0xff]
    %v149 = vld [vmem:[#allocation5 + $0x38] sm:$0xff]
    %v150 = vld [vmem:[#allocation5 + $0x40] sm:$0xff]
    %v151 = vld [vmem:[#allocation5 + $0x48] sm:$0xff]
    %v152 = vld [vmem:[#allocation5 + $0x50] sm:$0xff]
    %v153 = vld [vmem:[#allocation5 + $0x58] sm:$0xff]
    %v154 = vld [vmem:[#allocation5 + $0x60] sm:$0xff]
    %v155 = vld [vmem:[#allocation5 + $0x68] sm:$0xff]
    %v156 = vld [vmem:[#allocation5 + $0x70] sm:$0xff]
    %v157 = vld [vmem:[#allocation5 + $0x78] sm:$0xff]
    %v158 = vld [vmem:[%s2] sm:$0x1]
    %v160 = vlaneseq
    %v161 = vshrl.u32 %v160, 7
    %v162 = vsub.s32 0, %v161
    %v163 = vrot.slane %v158, %v162
    %165 = vmatprep.subr.mxu0 0.0
    %166 = vmatpush1.msra.mxu0 %v142
    %167 = vmatprep.subr.mxu0 0.0
    %168 = vmatpush1.msra.mxu0 %v143
    %169 = vmatprep.subr.mxu0 0.0
    %170 = vmatpush1.msra.mxu0 %v144
    %171 = vmatprep.subr.mxu0 0.0
    %172 = vmatpush1.msra.mxu0 %v145
    %173 = vmatprep.subr.mxu0 0.0
    %174 = vmatpush1.msra.mxu0 %v146
    %175 = vmatprep.subr.mxu0 0.0
    %176 = vmatpush1.msra.mxu0 %v147
    %177 = vmatprep.subr.mxu0 0.0
    %178 = vmatpush1.msra.mxu0 %v148
    %179 = vmatprep.subr.mxu0 0.0
    %180 = vmatpush1.msra.mxu0 %v149
    %181 = vmatprep.subr.mxu0 0.0
    %182 = vmatpush1.msra.mxu0 %v150
    %183 = vmatprep.subr.mxu0 0.0
    %184 = vmatpush1.msra.mxu0 %v151
    %185 = vmatprep.subr.mxu0 0.0
    %186 = vmatpush1.msra.mxu0 %v152
    %187 = vmatprep.subr.mxu0 0.0
    %188 = vmatpush1.msra.mxu0 %v153
    %189 = vmatprep.subr.mxu0 0.0
    %190 = vmatpush1.msra.mxu0 %v154
    %191 = vmatprep.subr.mxu0 0.0
    %192 = vmatpush1.msra.mxu0 %v155
    %193 = vmatprep.subr.mxu0 0.0
    %194 = vmatpush1.msra.mxu0 %v156
    %195 = vmatprep.subr.mxu0 0.0
    %196 = vmatpush1.msra.mxu0 %v157
    %197 = vmatprep.subr.mxu0 0.0
    %198 = vmatpush1.msra.mxu0 0.0
    %199 = vmatprep.subr.mxu0 0.0
    %200 = vmatpush1.msra.mxu0 0.0
    %201 = vmatprep.subr.mxu0 0.0
    %202 = vmatpush1.msra.mxu0 0.0
    %203 = vmatprep.subr.mxu0 0.0
    %204 = vmatpush1.msra.mxu0 0.0
    %205 = vmatprep.subr.mxu0 0.0
    %206 = vmatpush1.msra.mxu0 0.0
    %207 = vmatprep.subr.mxu0 0.0
    %208 = vmatpush1.msra.mxu0 0.0
    %209 = vmatprep.subr.mxu0 0.0
    %210 = vmatpush1.msra.mxu0 0.0
    %211 = vmatprep.subr.mxu0 0.0
    %212 = vmatpush1.msra.mxu0 0.0
    %213 = vmatprep.subr.mxu0 0.0
    %214 = vmatpush1.msra.mxu0 0.0
    %215 = vmatprep.subr.mxu0 0.0
    %216 = vmatpush1.msra.mxu0 0.0
    %217 = vmatprep.subr.mxu0 0.0
    %218 = vmatpush1.msra.mxu0 0.0
    %219 = vmatprep.subr.mxu0 0.0
    %220 = vmatpush1.msra.mxu0 0.0
    %221 = vmatprep.subr.mxu0 0.0
    %222 = vmatpush1.msra.mxu0 0.0
    %223 = vmatprep.subr.mxu0 0.0
    %224 = vmatpush1.msra.mxu0 0.0
    %225 = vmatprep.subr.mxu0 0.0
    %226 = vmatpush1.msra.mxu0 0.0
    %227 = vmatprep.subr.mxu0 0.0
    %228 = vmatpush1.msra.mxu0 0.0
    %229 = vmatprep.mubr.f32.mxu0 0.0
    %230 = vmatmul.mubr.f32.gmra.mrb[0].mxu0 %v140
    %v231 = vpop.f32.mrb[0].mxu0
    %v232 = vadd.f32 %v163, %v231
    %v233 = vpop.f32.mrb[0].mxu0
    %234 = vmatprep.mubr.f32.mxu0 0.0
    %235 = vmatmul.mubr.f32.gmra.mrb[0].mxu0 %v141
    %v236 = vpop.f32.mrb[0].mxu0
    %v237 = vadd.f32 %v163, %v236
    %v238 = vpop.f32.mrb[0].mxu0
    %239 = vdwg.mxu0
    %v240 = vmax.f32 %v232, 0.0
    %v241 = vmax.f32 %v237, 0.0
    %v242 = vld [vmem:[#allocation7] sm:$0xff]
    %v243 = vld [vmem:[#allocation7 + $0x8] sm:$0xff]
    %v244 = vld [vmem:[#allocation7 + $0x10] sm:$0xff]
    %v245 = vld [vmem:[#allocation7 + $0x18] sm:$0xff]
    %v246 = vld [vmem:[#allocation7 + $0x20] sm:$0xff]
    %v247 = vld [vmem:[#allocation7 + $0x28] sm:$0xff]
    %v248 = vld [vmem:[#allocation7 + $0x30] sm:$0xff]
    %v249 = vld [vmem:[#allocation7 + $0x38] sm:$0xff]
    %v250 = vld [vmem:[#allocation7 + $0x40] sm:$0xff]
    %v251 = vld [vmem:[#allocation7 + $0x48] sm:$0xff]
    %v252 = vld [vmem:[#allocation7 + $0x50] sm:$0xff]
    %v253 = vld [vmem:[#allocation7 + $0x58] sm:$0xff]
    %v254 = vld [vmem:[#allocation7 + $0x60] sm:$0xff]
    %v255 = vld [vmem:[#allocation7 + $0x68] sm:$0xff]
    %v256 = vld [vmem:[#allocation7 + $0x70] sm:$0xff]
    %v257 = vld [vmem:[#allocation7 + $0x78] sm:$0xff]
    %v258 = vld [vmem:[%s4] sm:$0x1]
    %v260 = vlaneseq
    %v261 = vshrl.u32 %v260, 7
    %v262 = vsub.s32 0, %v261
    %v263 = vrot.slane %v258, %v262
    %265 = vmatprep.subr.mxu0 0.0
    %266 = vmatpush1.msra.mxu0 %v242
    %267 = vmatprep.subr.mxu0 0.0
    %268 = vmatpush1.msra.mxu0 %v243
    %269 = vmatprep.subr.mxu0 0.0
    %270 = vmatpush1.msra.mxu0 %v244
    %271 = vmatprep.subr.mxu0 0.0
    %272 = vmatpush1.msra.mxu0 %v245
    %273 = vmatprep.subr.mxu0 0.0
    %274 = vmatpush1.msra.mxu0 %v246
    %275 = vmatprep.subr.mxu0 0.0
    %276 = vmatpush1.msra.mxu0 %v247
    %277 = vmatprep.subr.mxu0 0.0
    %278 = vmatpush1.msra.mxu0 %v248
    %279 = vmatprep.subr.mxu0 0.0
    %280 = vmatpush1.msra.mxu0 %v249
    %281 = vmatprep.subr.mxu0 0.0
    %282 = vmatpush1.msra.mxu0 %v250
    %283 = vmatprep.subr.mxu0 0.0
    %284 = vmatpush1.msra.mxu0 %v251
    %285 = vmatprep.subr.mxu0 0.0
    %286 = vmatpush1.msra.mxu0 %v252
    %287 = vmatprep.subr.mxu0 0.0
    %288 = vmatpush1.msra.mxu0 %v253
    %289 = vmatprep.subr.mxu0 0.0
    %290 = vmatpush1.msra.mxu0 %v254
    %291 = vmatprep.subr.mxu0 0.0
    %292 = vmatpush1.msra.mxu0 %v255
    %293 = vmatprep.subr.mxu0 0.0
    %294 = vmatpush1.msra.mxu0 %v256
    %295 = vmatprep.subr.mxu0 0.0
    %296 = vmatpush1.msra.mxu0 %v257
    %297 = vmatprep.subr.mxu0 0.0
    %298 = vmatpush1.msra.mxu0 0.0
    %299 = vmatprep.subr.mxu0 0.0
    %300 = vmatpush1.msra.mxu0 0.0
    %301 = vmatprep.subr.mxu0 0.0
    %302 = vmatpush1.msra.mxu0 0.0
    %303 = vmatprep.subr.mxu0 0.0
    %304 = vmatpush1.msra.mxu0 0.0
    %305 = vmatprep.subr.mxu0 0.0
    %306 = vmatpush1.msra.mxu0 0.0
    %307 = vmatprep.subr.mxu0 0.0
    %308 = vmatpush1.msra.mxu0 0.0
    %309 = vmatprep.subr.mxu0 0.0
    %310 = vmatpush1.msra.mxu0 0.0
    %311 = vmatprep.subr.mxu0 0.0
    %312 = vmatpush1.msra.mxu0 0.0
    %313 = vmatprep.subr.mxu0 0.0
    %314 = vmatpush1.msra.mxu0 0.0
    %315 = vmatprep.subr.mxu0 0.0
    %316 = vmatpush1.msra.mxu0 0.0
    %317 = vmatprep.subr.mxu0 0.0
    %318 = vmatpush1.msra.mxu0 0.0
    %319 = vmatprep.subr.mxu0 0.0
    %320 = vmatpush1.msra.mxu0 0.0
    %321 = vmatprep.subr.mxu0 0.0
    %322 = vmatpush1.msra.mxu0 0.0
    %323 = vmatprep.subr.mxu0 0.0
    %324 = vmatpush1.msra.mxu0 0.0
    %325 = vmatprep.subr.mxu0 0.0
    %326 = vmatpush1.msra.mxu0 0.0
    %327 = vmatprep.subr.mxu0 0.0
    %328 = vmatpush1.msra.mxu0 0.0
    %329 = vmatprep.mubr.f32.mxu0 0.0
    %330 = vmatmul.mubr.f32.gmra.mrb[0].mxu0 %v240
    %v331 = vpop.f32.mrb[0].mxu0
    %v332 = vadd.f32 %v263, %v331
    %v333 = vpop.f32.mrb[0].mxu0
    %334 = vmatprep.mubr.f32.mxu0 0.0
    %335 = vmatmul.mubr.f32.gmra.mrb[0].mxu0 %v241
    %v336 = vpop.f32.mrb[0].mxu0
    %v337 = vadd.f32 %v263, %v336
    %v338 = vpop.f32.mrb[0].mxu0
    %339 = vdwg.mxu0
    %v340 = vxor.u32 %v332, 2147483648
    %v341 = vxor.u32 %v337, 2147483648
    %v342 = vmul.f32 %v340, 1.442695
    %v343 = vpow.pop %v342
    %v344 = vmul.f32 %v341, 1.442695
    %v345 = vpow.pop %v344
    %v346 = vadd.f32 %v343, 1.0
    %v347 = vadd.f32 %v345, 1.0
    %v348 = vrcp.pop %v346
    %v349 = vmul.f32 1.0, %v348
    %v350 = vrcp.pop %v347
    %v351 = vmul.f32 1.0, %v350
    %v352 = vld [vmem:[#allocation8] sm:$0xff]
    %v353 = vld [vmem:[#allocation8 + $0x8] sm:$0xff]
    %v354 = vld [vmem:[#allocation8 + $0x10] sm:$0xff]
    %v355 = vld [vmem:[#allocation8 + $0x18] sm:$0xff]
    %v356 = vld [vmem:[#allocation8 + $0x20] sm:$0xff]
    %v357 = vld [vmem:[#allocation8 + $0x28] sm:$0xff]
    %v358 = vld [vmem:[#allocation8 + $0x30] sm:$0xff]
    %v359 = vld [vmem:[#allocation8 + $0x38] sm:$0xff]
    %v360 = vld [vmem:[#allocation8 + $0x40] sm:$0xff]
    %v361 = vld [vmem:[#allocation8 + $0x48] sm:$0xff]
    %v362 = vld [vmem:[#allocation8 + $0x50] sm:$0xff]
    %v363 = vld [vmem:[#allocation8 + $0x58] sm:$0xff]
    %v364 = vld [vmem:[#allocation8 + $0x60] sm:$0xff]
    %v365 = vld [vmem:[#allocation8 + $0x68] sm:$0xff]
    %v366 = vld [vmem:[#allocation8 + $0x70] sm:$0xff]
    %v367 = vld [vmem:[#allocation8 + $0x78] sm:$0xff]
    %v368 = vld [vmem:[%s6] sm:$0x1]
    %v370 = vlaneseq
    %v371 = vshrl.u32 %v370, 7
    %v372 = vsub.s32 0, %v371
    %v373 = vrot.slane %v368, %v372
    %375 = vmatprep.subr.mxu0 0.0
    %376 = vmatpush1.msra.mxu0 %v352
    %377 = vmatprep.subr.mxu0 0.0
    %378 = vmatpush1.msra.mxu0 %v353
    %379 = vmatprep.subr.mxu0 0.0
    %380 = vmatpush1.msra.mxu0 %v354
    %381 = vmatprep.subr.mxu0 0.0
    %382 = vmatpush1.msra.mxu0 %v355
    %383 = vmatprep.subr.mxu0 0.0
    %384 = vmatpush1.msra.mxu0 %v356
    %385 = vmatprep.subr.mxu0 0.0
    %386 = vmatpush1.msra.mxu0 %v357
    %387 = vmatprep.subr.mxu0 0.0
    %388 = vmatpush1.msra.mxu0 %v358
    %389 = vmatprep.subr.mxu0 0.0
    %390 = vmatpush1.msra.mxu0 %v359
    %391 = vmatprep.subr.mxu0 0.0
    %392 = vmatpush1.msra.mxu0 %v360
    %393 = vmatprep.subr.mxu0 0.0
    %394 = vmatpush1.msra.mxu0 %v361
    %395 = vmatprep.subr.mxu0 0.0
    %396 = vmatpush1.msra.mxu0 %v362
    %397 = vmatprep.subr.mxu0 0.0
    %398 = vmatpush1.msra.mxu0 %v363
    %399 = vmatprep.subr.mxu0 0.0
    %400 = vmatpush1.msra.mxu0 %v364
    %401 = vmatprep.subr.mxu0 0.0
    %402 = vmatpush1.msra.mxu0 %v365
    %403 = vmatprep.subr.mxu0 0.0
    %404 = vmatpush1.msra.mxu0 %v366
    %405 = vmatprep.subr.mxu0 0.0
    %406 = vmatpush1.msra.mxu0 %v367
    %407 = vmatprep.subr.mxu0 0.0
    %408 = vmatpush1.msra.mxu0 0.0
    %409 = vmatprep.subr.mxu0 0.0
    %410 = vmatpush1.msra.mxu0 0.0
    %411 = vmatprep.subr.mxu0 0.0
    %412 = vmatpush1.msra.mxu0 0.0
    %413 = vmatprep.subr.mxu0 0.0
    %414 = vmatpush1.msra.mxu0 0.0
    %415 = vmatprep.subr.mxu0 0.0
    %416 = vmatpush1.msra.mxu0 0.0
    %417 = vmatprep.subr.mxu0 0.0
    %418 = vmatpush1.msra.mxu0 0.0
    %419 = vmatprep.subr.mxu0 0.0
    %420 = vmatpush1.msra.mxu0 0.0
    %421 = vmatprep.subr.mxu0 0.0
    %422 = vmatpush1.msra.mxu0 0.0
    %423 = vmatprep.subr.mxu0 0.0
    %424 = vmatpush1.msra.mxu0 0.0
    %425 = vmatprep.subr.mxu0 0.0
    %426 = vmatpush1.msra.mxu0 0.0
    %427 = vmatprep.subr.mxu0 0.0
    %428 = vmatpush1.msra.mxu0 0.0
    %429 = vmatprep.subr.mxu0 0.0
    %430 = vmatpush1.msra.mxu0 0.0
    %431 = vmatprep.subr.mxu0 0.0
    %432 = vmatpush1.msra.mxu0 0.0
    %433 = vmatprep.subr.mxu0 0.0
    %434 = vmatpush1.msra.mxu0 0.0
    %435 = vmatprep.subr.mxu0 0.0
    %436 = vmatpush1.msra.mxu0 0.0
    %437 = vmatprep.subr.mxu0 0.0
    %438 = vmatpush1.msra.mxu0 0.0
    %439 = vmatprep.mubr.f32.mxu0 0.0
    %440 = vmatmul.mubr.f32.gmra.mrb[0].mxu0 %v349
    %v441 = vpop.f32.mrb[0].mxu0
    %v442 = vadd.f32 %v373, %v441
    %v443 = vpop.f32.mrb[0].mxu0
    %444 = vmatprep.mubr.f32.mxu0 0.0
    %445 = vmatmul.mubr.f32.gmra.mrb[0].mxu0 %v351
    %v446 = vpop.f32.mrb[0].mxu0
    %v447 = vadd.f32 %v373, %v446
    %v448 = vpop.f32.mrb[0].mxu0
    %449 = vdwg.mxu0
    %v450 = vxor.u32 %v442, 2147483648
    %v451 = vxor.u32 %v447, 2147483648
    %v452 = vmul.f32 %v450, 1.442695
    %v453 = vpow.pop %v452
    %v454 = vmul.f32 %v451, 1.442695
    %v455 = vpow.pop %v454
    %v456 = vadd.f32 %v453, 1.0
    %v457 = vadd.f32 %v455, 1.0
    %v458 = vrcp.pop %v456
    %v459 = vmul.f32 1.0, %v458
    %v460 = vrcp.pop %v457
    %v461 = vmul.f32 1.0, %v460
    %v462 = vld [vmem:[#allocation10] sm:$0xff]
    %v463 = vld [vmem:[#allocation10 + $0x8] sm:$0xff]
    %v464 = vld [vmem:[#allocation10 + $0x10] sm:$0xff]
    %v465 = vld [vmem:[#allocation10 + $0x18] sm:$0xff]
    %v466 = vld [vmem:[#allocation10 + $0x20] sm:$0xff]
    %v467 = vld [vmem:[#allocation10 + $0x28] sm:$0xff]
    %v468 = vld [vmem:[#allocation10 + $0x30] sm:$0xff]
    %v469 = vld [vmem:[#allocation10 + $0x38] sm:$0xff]
    %v470 = vld [vmem:[#allocation10 + $0x40] sm:$0xff]
    %v471 = vld [vmem:[#allocation10 + $0x48] sm:$0xff]
    %v472 = vld [vmem:[#allocation10 + $0x50] sm:$0xff]
    %v473 = vld [vmem:[#allocation10 + $0x58] sm:$0xff]
    %v474 = vld [vmem:[#allocation10 + $0x60] sm:$0xff]
    %v475 = vld [vmem:[#allocation10 + $0x68] sm:$0xff]
    %v476 = vld [vmem:[#allocation10 + $0x70] sm:$0xff]
    %v477 = vld [vmem:[#allocation10 + $0x78] sm:$0xff]
    %v478 = vld [vmem:[%s8] sm:$0x1]
    %v480 = vlaneseq
    %v481 = vshrl.u32 %v480, 7
    %v482 = vsub.s32 0, %v481
    %v483 = vrot.slane %v478, %v482
    %485 = vmatprep.subr.mxu0 0.0
    %486 = vmatpush1.msra.mxu0 %v462
    %487 = vmatprep.subr.mxu0 0.0
    %488 = vmatpush1.msra.mxu0 %v463
    %489 = vmatprep.subr.mxu0 0.0
    %490 = vmatpush1.msra.mxu0 %v464
    %491 = vmatprep.subr.mxu0 0.0
    %492 = vmatpush1.msra.mxu0 %v465
    %493 = vmatprep.subr.mxu0 0.0
    %494 = vmatpush1.msra.mxu0 %v466
    %495 = vmatprep.subr.mxu0 0.0
    %496 = vmatpush1.msra.mxu0 %v467
    %497 = vmatprep.subr.mxu0 0.0
    %498 = vmatpush1.msra.mxu0 %v468
    %499 = vmatprep.subr.mxu0 0.0
    %500 = vmatpush1.msra.mxu0 %v469
    %501 = vmatprep.subr.mxu0 0.0
    %502 = vmatpush1.msra.mxu0 %v470
    %503 = vmatprep.subr.mxu0 0.0
    %504 = vmatpush1.msra.mxu0 %v471
    %505 = vmatprep.subr.mxu0 0.0
    %506 = vmatpush1.msra.mxu0 %v472
    %507 = vmatprep.subr.mxu0 0.0
    %508 = vmatpush1.msra.mxu0 %v473
    %509 = vmatprep.subr.mxu0 0.0
    %510 = vmatpush1.msra.mxu0 %v474
    %511 = vmatprep.subr.mxu0 0.0
    %512 = vmatpush1.msra.mxu0 %v475
    %513 = vmatprep.subr.mxu0 0.0
    %514 = vmatpush1.msra.mxu0 %v476
    %515 = vmatprep.subr.mxu0 0.0
    %516 = vmatpush1.msra.mxu0 %v477
    %517 = vmatprep.subr.mxu0 0.0
    %518 = vmatpush1.msra.mxu0 0.0
    %519 = vmatprep.subr.mxu0 0.0
    %520 = vmatpush1.msra.mxu0 0.0
    %521 = vmatprep.subr.mxu0 0.0
    %522 = vmatpush1.msra.mxu0 0.0
    %523 = vmatprep.subr.mxu0 0.0
    %524 = vmatpush1.msra.mxu0 0.0
    %525 = vmatprep.subr.mxu0 0.0
    %526 = vmatpush1.msra.mxu0 0.0
    %527 = vmatprep.subr.mxu0 0.0
    %528 = vmatpush1.msra.mxu0 0.0
    %529 = vmatprep.subr.mxu0 0.0
    %530 = vmatpush1.msra.mxu0 0.0
    %531 = vmatprep.subr.mxu0 0.0
    %532 = vmatpush1.msra.mxu0 0.0
    %533 = vmatprep.subr.mxu0 0.0
    %534 = vmatpush1.msra.mxu0 0.0
    %535 = vmatprep.subr.mxu0 0.0
    %536 = vmatpush1.msra.mxu0 0.0
    %537 = vmatprep.subr.mxu0 0.0
    %538 = vmatpush1.msra.mxu0 0.0
    %539 = vmatprep.subr.mxu0 0.0
    %540 = vmatpush1.msra.mxu0 0.0
    %541 = vmatprep.subr.mxu0 0.0
    %542 = vmatpush1.msra.mxu0 0.0
    %543 = vmatprep.subr.mxu0 0.0
    %544 = vmatpush1.msra.mxu0 0.0
    %545 = vmatprep.subr.mxu0 0.0
    %546 = vmatpush1.msra.mxu0 0.0
    %547 = vmatprep.subr.mxu0 0.0
    %548 = vmatpush1.msra.mxu0 0.0
    %549 = vmatprep.mubr.f32.mxu0 0.0
    %550 = vmatmul.mubr.f32.gmra.mrb[0].mxu0 %v459
    %v551 = vpop.f32.mrb[0].mxu0
    %v552 = vadd.f32 %v483, %v551
    %v553 = vpop.f32.mrb[0].mxu0
    %554 = vmatprep.mubr.f32.mxu0 0.0
    %555 = vmatmul.mubr.f32.gmra.mrb[0].mxu0 %v461
    %v556 = vpop.f32.mrb[0].mxu0
    %v557 = vadd.f32 %v483, %v556
    %v558 = vpop.f32.mrb[0].mxu0
    %559 = vdwg.mxu0
    %v560 = vxor.u32 %v552, 2147483648
    %v561 = vxor.u32 %v557, 2147483648
    %v562 = vmul.f32 %v560, 1.442695
    %v563 = vpow.pop %v562
    %v564 = vmul.f32 %v561, 1.442695
    %v565 = vpow.pop %v564
    %v566 = vadd.f32 %v563, 1.0
    %v567 = vadd.f32 %v565, 1.0
    %v568 = vrcp.pop %v566
    %v569 = vmul.f32 1.0, %v568
    %v570 = vrcp.pop %v567
    %v571 = vmul.f32 1.0, %v570
    %v572 = vld [vmem:[#allocation11] sm:$0xff]
    %v573 = vld [vmem:[#allocation11 + $0x8] sm:$0xff]
    %v574 = vld [vmem:[#allocation11 + $0x10] sm:$0xff]
    %v575 = vld [vmem:[#allocation11 + $0x18] sm:$0xff]
    %v576 = vld [vmem:[#allocation11 + $0x20] sm:$0xff]
    %v577 = vld [vmem:[#allocation11 + $0x28] sm:$0xff]
    %v578 = vld [vmem:[#allocation11 + $0x30] sm:$0xff]
    %v579 = vld [vmem:[#allocation11 + $0x38] sm:$0xff]
    %v580 = vld [vmem:[#allocation11 + $0x40] sm:$0xff]
    %v581 = vld [vmem:[#allocation11 + $0x48] sm:$0xff]
    %v582 = vld [vmem:[#allocation11 + $0x50] sm:$0xff]
    %v583 = vld [vmem:[#allocation11 + $0x58] sm:$0xff]
    %v584 = vld [vmem:[#allocation11 + $0x60] sm:$0xff]
    %v585 = vld [vmem:[#allocation11 + $0x68] sm:$0xff]
    %v586 = vld [vmem:[#allocation11 + $0x70] sm:$0xff]
    %v587 = vld [vmem:[#allocation11 + $0x78] sm:$0xff]
    %v588 = vld [vmem:[%s10] sm:$0x1]
    %v590 = vlaneseq
    %v591 = vshrl.u32 %v590, 7
    %v592 = vsub.s32 0, %v591
    %v593 = vrot.slane %v588, %v592
    %595 = vmatprep.subr.mxu0 0.0
    %596 = vmatpush1.msra.mxu0 %v572
    %597 = vmatprep.subr.mxu0 0.0
    %598 = vmatpush1.msra.mxu0 %v573
    %599 = vmatprep.subr.mxu0 0.0
    %600 = vmatpush1.msra.mxu0 %v574
    %601 = vmatprep.subr.mxu0 0.0
    %602 = vmatpush1.msra.mxu0 %v575
    %603 = vmatprep.subr.mxu0 0.0
    %604 = vmatpush1.msra.mxu0 %v576
    %605 = vmatprep.subr.mxu0 0.0
    %606 = vmatpush1.msra.mxu0 %v577
    %607 = vmatprep.subr.mxu0 0.0
    %608 = vmatpush1.msra.mxu0 %v578
    %609 = vmatprep.subr.mxu0 0.0
    %610 = vmatpush1.msra.mxu0 %v579
    %611 = vmatprep.subr.mxu0 0.0
    %612 = vmatpush1.msra.mxu0 %v580
    %613 = vmatprep.subr.mxu0 0.0
    %614 = vmatpush1.msra.mxu0 %v581
    %615 = vmatprep.subr.mxu0 0.0
    %616 = vmatpush1.msra.mxu0 %v582
    %617 = vmatprep.subr.mxu0 0.0
    %618 = vmatpush1.msra.mxu0 %v583
    %619 = vmatprep.subr.mxu0 0.0
    %620 = vmatpush1.msra.mxu0 %v584
    %621 = vmatprep.subr.mxu0 0.0
    %622 = vmatpush1.msra.mxu0 %v585
    %623 = vmatprep.subr.mxu0 0.0
    %624 = vmatpush1.msra.mxu0 %v586
    %625 = vmatprep.subr.mxu0 0.0
    %626 = vmatpush1.msra.mxu0 %v587
    %627 = vmatprep.subr.mxu0 0.0
    %628 = vmatpush1.msra.mxu0 0.0
    %629 = vmatprep.subr.mxu0 0.0
    %630 = vmatpush1.msra.mxu0 0.0
    %631 = vmatprep.subr.mxu0 0.0
    %632 = vmatpush1.msra.mxu0 0.0
    %633 = vmatprep.subr.mxu0 0.0
    %634 = vmatpush1.msra.mxu0 0.0
    %635 = vmatprep.subr.mxu0 0.0
    %636 = vmatpush1.msra.mxu0 0.0
    %637 = vmatprep.subr.mxu0 0.0
    %638 = vmatpush1.msra.mxu0 0.0
    %639 = vmatprep.subr.mxu0 0.0
    %640 = vmatpush1.msra.mxu0 0.0
    %641 = vmatprep.subr.mxu0 0.0
    %642 = vmatpush1.msra.mxu0 0.0
    %643 = vmatprep.subr.mxu0 0.0
    %644 = vmatpush1.msra.mxu0 0.0
    %645 = vmatprep.subr.mxu0 0.0
    %646 = vmatpush1.msra.mxu0 0.0
    %647 = vmatprep.subr.mxu0 0.0
    %648 = vmatpush1.msra.mxu0 0.0
    %649 = vmatprep.subr.mxu0 0.0
    %650 = vmatpush1.msra.mxu0 0.0
    %651 = vmatprep.subr.mxu0 0.0
    %652 = vmatpush1.msra.mxu0 0.0
    %653 = vmatprep.subr.mxu0 0.0
    %654 = vmatpush1.msra.mxu0 0.0
    %655 = vmatprep.subr.mxu0 0.0
    %656 = vmatpush1.msra.mxu0 0.0
    %657 = vmatprep.subr.mxu0 0.0
    %658 = vmatpush1.msra.mxu0 0.0
    %659 = vmatprep.mubr.f32.mxu0 0.0
    %660 = vmatmul.mubr.f32.gmra.mrb[0].mxu0 %v569
    %v661 = vpop.f32.mrb[0].mxu0
    %v662 = vadd.f32 %v593, %v661
    %v663 = vpop.f32.mrb[0].mxu0
    %664 = vmatprep.mubr.f32.mxu0 0.0
    %665 = vmatmul.mubr.f32.gmra.mrb[0].mxu0 %v571
    %v666 = vpop.f32.mrb[0].mxu0
    %v667 = vadd.f32 %v593, %v666
    %v668 = vpop.f32.mrb[0].mxu0
    %669 = vdwg.mxu0
    %v670 = vmax.f32 %v662, 0.0
    %v671 = vmax.f32 %v667, 0.0
    %v672 = vld [vmem:[#allocation13] sm:$0xff]
    %v673 = vld [vmem:[#allocation13 + $0x8] sm:$0xff]
    %v674 = vld [vmem:[#allocation13 + $0x10] sm:$0xff]
    %v675 = vld [vmem:[#allocation13 + $0x18] sm:$0xff]
    %v676 = vld [vmem:[#allocation13 + $0x20] sm:$0xff]
    %v677 = vld [vmem:[#allocation13 + $0x28] sm:$0xff]
    %v678 = vld [vmem:[#allocation13 + $0x30] sm:$0xff]
    %v679 = vld [vmem:[#allocation13 + $0x38] sm:$0xff]
    %v680 = vld [vmem:[#allocation13 + $0x40] sm:$0xff]
    %v681 = vld [vmem:[#allocation13 + $0x48] sm:$0xff]
    %v682 = vld [vmem:[#allocation13 + $0x50] sm:$0xff]
    %v683 = vld [vmem:[#allocation13 + $0x58] sm:$0xff]
    %v684 = vld [vmem:[#allocation13 + $0x60] sm:$0xff]
    %v685 = vld [vmem:[#allocation13 + $0x68] sm:$0xff]
    %v686 = vld [vmem:[#allocation13 + $0x70] sm:$0xff]
    %v687 = vld [vmem:[#allocation13 + $0x78] sm:$0xff]
    %v688 = vld [vmem:[%s12] sm:$0x1]
    %v690 = vlaneseq
    %v691 = vshrl.u32 %v690, 7
    %v692 = vsub.s32 0, %v691
    %v693 = vrot.slane %v688, %v692
    %695 = vmatprep.subr.mxu0 0.0
    %696 = vmatpush1.msra.mxu0 %v672
    %697 = vmatprep.subr.mxu0 0.0
    %698 = vmatpush1.msra.mxu0 %v673
    %699 = vmatprep.subr.mxu0 0.0
    %700 = vmatpush1.msra.mxu0 %v674
    %701 = vmatprep.subr.mxu0 0.0
    %702 = vmatpush1.msra.mxu0 %v675
    %703 = vmatprep.subr.mxu0 0.0
    %704 = vmatpush1.msra.mxu0 %v676
    %705 = vmatprep.subr.mxu0 0.0
    %706 = vmatpush1.msra.mxu0 %v677
    %707 = vmatprep.subr.mxu0 0.0
    %708 = vmatpush1.msra.mxu0 %v678
    %709 = vmatprep.subr.mxu0 0.0
    %710 = vmatpush1.msra.mxu0 %v679
    %711 = vmatprep.subr.mxu0 0.0
    %712 = vmatpush1.msra.mxu0 %v680
    %713 = vmatprep.subr.mxu0 0.0
    %714 = vmatpush1.msra.mxu0 %v681
    %715 = vmatprep.subr.mxu0 0.0
    %716 = vmatpush1.msra.mxu0 %v682
    %717 = vmatprep.subr.mxu0 0.0
    %718 = vmatpush1.msra.mxu0 %v683
    %719 = vmatprep.subr.mxu0 0.0
    %720 = vmatpush1.msra.mxu0 %v684
    %721 = vmatprep.subr.mxu0 0.0
    %722 = vmatpush1.msra.mxu0 %v685
    %723 = vmatprep.subr.mxu0 0.0
    %724 = vmatpush1.msra.mxu0 %v686
    %725 = vmatprep.subr.mxu0 0.0
    %726 = vmatpush1.msra.mxu0 %v687
    %727 = vmatprep.subr.mxu0 0.0
    %728 = vmatpush1.msra.mxu0 0.0
    %729 = vmatprep.subr.mxu0 0.0
    %730 = vmatpush1.msra.mxu0 0.0
    %731 = vmatprep.subr.mxu0 0.0
    %732 = vmatpush1.msra.mxu0 0.0
    %733 = vmatprep.subr.mxu0 0.0
    %734 = vmatpush1.msra.mxu0 0.0
    %735 = vmatprep.subr.mxu0 0.0
    %736 = vmatpush1.msra.mxu0 0.0
    %737 = vmatprep.subr.mxu0 0.0
    %738 = vmatpush1.msra.mxu0 0.0
    %739 = vmatprep.subr.mxu0 0.0
    %740 = vmatpush1.msra.mxu0 0.0
    %741 = vmatprep.subr.mxu0 0.0
    %742 = vmatpush1.msra.mxu0 0.0
    %743 = vmatprep.subr.mxu0 0.0
    %744 = vmatpush1.msra.mxu0 0.0
    %745 = vmatprep.subr.mxu0 0.0
    %746 = vmatpush1.msra.mxu0 0.0
    %747 = vmatprep.subr.mxu0 0.0
    %748 = vmatpush1.msra.mxu0 0.0
    %749 = vmatprep.subr.mxu0 0.0
    %750 = vmatpush1.msra.mxu0 0.0
    %751 = vmatprep.subr.mxu0 0.0
    %752 = vmatpush1.msra.mxu0 0.0
    %753 = vmatprep.subr.mxu0 0.0
    %754 = vmatpush1.msra.mxu0 0.0
    %755 = vmatprep.subr.mxu0 0.0
    %756 = vmatpush1.msra.mxu0 0.0
    %757 = vmatprep.subr.mxu0 0.0
    %758 = vmatpush1.msra.mxu0 0.0
    %759 = vmatprep.mubr.f32.mxu0 0.0
    %760 = vmatmul.mubr.f32.gmra.mrb[0].mxu0 %v670
    %v761 = vpop.f32.mrb[0].mxu0
    %v762 = vadd.f32 %v693, %v761
    %v763 = vpop.f32.mrb[0].mxu0
    %764 = vmatprep.mubr.f32.mxu0 0.0
    %765 = vmatmul.mubr.f32.gmra.mrb[0].mxu0 %v671
    %v766 = vpop.f32.mrb[0].mxu0
    %v767 = vadd.f32 %v693, %v766
    %v768 = vpop.f32.mrb[0].mxu0
    %769 = vdwg.mxu0
    %v770 = vmax.f32 %v762, 0.0
    %v771 = vmax.f32 %v767, 0.0
    %772 = vst [vmem:[#allocation14] sm:$0xff] %v770
    %773 = vst [vmem:[#allocation14 + $0x8] sm:$0xff] %v771
    // Predicated region
    $region82: #{tpu_custom_call.1} parent=1 // pred_check
      _
    $region83: #{tpu_custom_call.1} parent=1 // pred_check_branch
      %775 = sbr.rel (0) target = $region85
    $region84: #{tpu_custom_call.1} parent=1 // pred_region
      %s777 = ssub.s32 256, 256
      %778 = vsyncadd [#allocation4], %s777
      %s779 = sshll.u32 [#allocation14], 4
      %s780 = int_to_ptr.vmem [resolvable:$true] %s779
      %785 = dma.vmem_to_hbm [thread:$0]  %s780, 256, %s13, [#allocation4], 128, 128, 8
    $region85: #{tpu_custom_call.1} parent=1 // pred_fallthru
      _
    // Predicated region
    $region86: #{tpu_custom_call.1} parent=1 // pred_check
      _
    $region87: #{tpu_custom_call.1} parent=1 // pred_check_branch
      %787 = sbr.rel (0) target = $region89
    $region88: #{tpu_custom_call.1} parent=1 // pred_region
      %788 = dma.done [#allocation4], 256
    $region89: #{tpu_custom_call.1} parent=1 // pred_fallthru
      _
    %789 = vsyncpa [#allocation3], 1
    %790 = vsyncpa [#allocation6], 1
    %791 = vsyncpa [#allocation9], 1
    %792 = vsyncpa [#allocation12], 1
    %793 = vsyncpa [#allocation4], 1

</llo_original>
